<compile_context>
chip_gen: v5e
topology: v5e:2x2
jax: 0.10.0
libtpu: 0.0.40
codegen_flags: <defaults>
</compile_context>

<pallas_src>
import functools

import jax
import jax.numpy as jnp
from jax.experimental import pallas as pl
from jax.experimental.pallas import tpu as pltpu

EPS = 1e-5
EXPANSION = 4


def _round_up(x, m):
    return ((x + m - 1) // m) * m


# ---------------------------------------------------------------------------
# Pallas kernel: tiled fused matmul + BN shift (+ residual) (+ ReLU)
# ---------------------------------------------------------------------------
def _fused_matmul_kernel(*refs, relu, has_res):
    if has_res:
        x_ref, w_ref, shift_ref, res_ref, o_ref, acc_ref = refs
    else:
        x_ref, w_ref, shift_ref, o_ref, acc_ref = refs

    k = pl.program_id(2)

    @pl.when(k == 0)
    def _():
        acc_ref[...] = jnp.zeros_like(acc_ref)

    acc_ref[...] += jnp.dot(
        x_ref[...], w_ref[...], preferred_element_type=jnp.float32
    )

    @pl.when(k == pl.num_programs(2) - 1)
    def _():
        out = acc_ref[...] + shift_ref[...]
        if has_res:
            out = out + res_ref[...].astype(jnp.float32)
        if relu:
            out = jnp.maximum(out, 0.0)
        o_ref[...] = out.astype(o_ref.dtype)


def fused_matmul_bn(x2d, w2d, shift, residual=None, relu=True,
                    out_dtype=jnp.float32, tm=256, tn=256, tk=512):
    """x2d: (M, K), w2d: (K, N) with BN scale pre-folded, shift: (N,),
    residual: (M, N) or None.  Returns (M, N) in `out_dtype`."""
    M, K = x2d.shape
    K2, N = w2d.shape
    assert K == K2

    # Tile sizes: lane-dense (multiple-of-128) N/K tiles, sublane-aligned M.
    # Defaults (256/256/512) fit comfortably within v7x's 64 MiB VMEM with
    # double buffering; small problems shrink to a single tile.
    tm = min(tm, _round_up(M, 8))
    tn = min(tn, _round_up(N, 128))
    tk = min(tk, _round_up(K, 128))
    Mp, Np, Kp = _round_up(M, tm), _round_up(N, tn), _round_up(K, tk)
    gm, gn, gk = Mp // tm, Np // tn, Kp // tk

    x_p = jnp.pad(x2d, ((0, Mp - M), (0, Kp - K))).astype(jnp.bfloat16)
    w_p = jnp.pad(w2d, ((0, Kp - K), (0, Np - N))).astype(jnp.bfloat16)
    s_p = jnp.pad(shift.astype(jnp.float32), (0, Np - N)).reshape(1, Np)

    args = [x_p, w_p, s_p]
    in_specs = [
        pl.BlockSpec((tm, tk), lambda i, j, k: (i, k)),
        pl.BlockSpec((tk, tn), lambda i, j, k: (k, j)),
        pl.BlockSpec((1, tn), lambda i, j, k: (0, j)),
    ]
    res_bytes = 0
    if residual is not None:
        assert residual.shape == (M, N)
        r_p = jnp.pad(residual, ((0, Mp - M), (0, Np - N)))
        args.append(r_p)
        in_specs.append(pl.BlockSpec((tm, tn), lambda i, j, k: (i, j)))
        res_bytes = Mp * Np * jnp.dtype(residual.dtype).itemsize

    out_specs = pl.BlockSpec((tm, tn), lambda i, j, k: (i, j))

    cost = pl.CostEstimate(
        flops=2 * Mp * Np * Kp,
        transcendentals=0,
        bytes_accessed=int(
            2 * Mp * Kp * gn            # bf16 X, re-read per N-tile
            + 2 * Kp * Np * gm          # bf16 W, re-read per M-tile
            + Mp * Np * jnp.dtype(out_dtype).itemsize
            + res_bytes
        ),
    )

    kern = functools.partial(
        _fused_matmul_kernel, relu=relu, has_res=residual is not None
    )
    out = pl.pallas_call(
        kern,
        out_shape=jax.ShapeDtypeStruct((Mp, Np), out_dtype),
        grid_spec=pltpu.PrefetchScalarGridSpec(
            num_scalar_prefetch=0,
            grid=(gm, gn, gk),
            in_specs=in_specs,
            out_specs=out_specs,
            scratch_shapes=[pltpu.VMEM((tm, tn), jnp.float32)],
        ),
        compiler_params=pltpu.CompilerParams(
            dimension_semantics=("parallel", "parallel", "arbitrary"),
            vmem_limit_bytes=32 * 1024 * 1024,
        ),
        cost_estimate=cost,
    )(*args)
    return out[:M, :N]


# ---------------------------------------------------------------------------
# Glue: BN folding, conv-as-matmul wrappers
# ---------------------------------------------------------------------------
def bn_fold(gamma, beta, mean, var):
    scale = gamma / jnp.sqrt(var + EPS)
    shift = beta - mean * scale
    return scale, shift


def conv1x1_bn(x_nhwc, w_oihw, bn, stride=1, residual=None, relu=True,
               out_dtype=jnp.bfloat16):
    """1x1 conv (+ optional stride) + folded BN via the fused tiled matmul."""
    if stride != 1:
        # TODO(synk): fold the stride-2 subsample into the Pallas index_map
        # instead of a strided-slice copy in HBM.
        x_nhwc = x_nhwc[:, ::stride, ::stride, :]
    N, H, W, C = x_nhwc.shape
    Cout = w_oihw.shape[0]
    scale, shift = bn_fold(*bn)
    w2d = jnp.transpose(w_oihw[:, :, 0, 0], (1, 0)) * scale[None, :]  # fold BN scale
    x2d = x_nhwc.reshape(N * H * W, C)
    res2d = None if residual is None else residual.reshape(N * H * W, Cout)
    out = fused_matmul_bn(x2d, w2d, shift, residual=res2d, relu=relu,
                          out_dtype=out_dtype)
    return out.reshape(N, H, W, Cout)


def _im2col_3x3(x_nhwc, stride):
    # TODO(synk): replace with an in-kernel haloed-tile 3x3 (9 shifted dot
    # accumulations over a (tm_h+2, W+2, C) VMEM tile) to avoid the 9x HBM
    # inflation; kept here in bf16 which already halves that traffic.
    N, H, W, C = x_nhwc.shape
    xp = jnp.pad(x_nhwc, ((0, 0), (1, 1), (1, 1), (0, 0)))
    Ho = (H + 2 - 3) // stride + 1
    Wo = (W + 2 - 3) // stride + 1
    cols = []
    for kh in range(3):
        for kw in range(3):
            sl = xp[
                :,
                kh: kh + stride * (Ho - 1) + 1: stride,
                kw: kw + stride * (Wo - 1) + 1: stride,
                :,
            ]
            cols.append(sl)
    patches = jnp.concatenate(cols, axis=-1)  # (N, Ho, Wo, 9*C), order (kh, kw, cin)
    return patches.reshape(N * Ho * Wo, 9 * C), (N, Ho, Wo)


def conv3x3_bn(x_nhwc, w_oihw, bn, stride=1, relu=True, out_dtype=jnp.bfloat16):
    """3x3 conv (padding=1) + folded BN via im2col + fused tiled matmul."""
    Cout, Cin, _, _ = w_oihw.shape
    x2d, (N, Ho, Wo) = _im2col_3x3(x_nhwc.astype(jnp.bfloat16), stride)
    scale, shift = bn_fold(*bn)
    # (Cout, Cin, 3, 3) -> (kh, kw, cin, cout) -> (9*Cin, Cout); matches patch order.
    w2d = jnp.transpose(w_oihw, (2, 3, 1, 0)).reshape(9 * Cin, Cout) * scale[None, :]
    out = fused_matmul_bn(x2d, w2d, shift, relu=relu, out_dtype=out_dtype)
    return out.reshape(N, Ho, Wo, Cout)


# ---------------------------------------------------------------------------
# Bottleneck forward (matches the PyTorch module semantics, eval-mode BN)
# ---------------------------------------------------------------------------
def bottleneck_forward(x_nchw, params, stride):
    x = jnp.transpose(x_nchw, (0, 2, 3, 1))          # NCHW -> NHWC
    x_bf16 = x.astype(jnp.bfloat16)                  # bf16 activations in-flight

    # Shortcut branch (conv1x1(stride) + BN projection, or identity).
    if "w_sc" in params:
        sc = conv1x1_bn(x_bf16, params["w_sc"], params["bn_sc"], stride=stride,
                        relu=False, out_dtype=jnp.bfloat16)
    else:
        sc = x_bf16

    out = conv1x1_bn(x_bf16, params["w1"], params["bn1"], relu=True,
                     out_dtype=jnp.bfloat16)
    out = conv3x3_bn(out, params["w2"], params["bn2"], stride=stride, relu=True,
                     out_dtype=jnp.bfloat16)
    # Final 1x1 conv + BN3, fused with residual add and final ReLU; f32 output.
    out = conv1x1_bn(out, params["w3"], params["bn3"], residual=sc, relu=True,
                     out_dtype=jnp.float32)

    return jnp.transpose(out, (0, 3, 1, 2))          # NHWC -> NCHW


# ---------------------------------------------------------------------------
# Pure-JAX reference (lax.conv, f32 HIGHEST) for correctness checking
# ---------------------------------------------------------------------------
def _ref_conv(x_nhwc, w_oihw, stride, pad):
    w_hwio = jnp.transpose(w_oihw, (2, 3, 1, 0))
    return jax.lax.conv_general_dilated(
        x_nhwc, w_hwio, (stride, stride), [(pad, pad), (pad, pad)],
        dimension_numbers=("NHWC", "HWIO", "NHWC"),
        precision=jax.lax.Precision.HIGHEST,
    )


def _ref_bn(x, bn):
    gamma, beta, mean, var = bn
    return (x - mean) / jnp.sqrt(var + EPS) * gamma + beta


def ref_bottleneck(x_nchw, params, stride):
    x = jnp.transpose(x_nchw, (0, 2, 3, 1))
    out = jax.nn.relu(_ref_bn(_ref_conv(x, params["w1"], 1, 0), params["bn1"]))
    out = jax.nn.relu(_ref_bn(_ref_conv(out, params["w2"], stride, 1), params["bn2"]))
    out = _ref_bn(_ref_conv(out, params["w3"], 1, 0), params["bn3"])
    if "w_sc" in params:
        sc = _ref_bn(_ref_conv(x, params["w_sc"], stride, 0), params["bn_sc"])
    else:
        sc = x
    out = jax.nn.relu(out + sc)
    return jnp.transpose(out, (0, 3, 1, 2))


# ---------------------------------------------------------------------------
def make_params(key, in_planes, planes, stride):
    out_planes = EXPANSION * planes
    ks = jax.random.split(key, 16)

    def bn_params(k, c):
        k1, k2, k3, k4 = jax.random.split(k, 4)
        gamma = 1.0 + 0.1 * jax.random.normal(k1, (c,), jnp.float32)
        beta = 0.1 * jax.random.normal(k2, (c,), jnp.float32)
        mean = 0.1 * jax.random.normal(k3, (c,), jnp.float32)
        var = 0.5 + jnp.abs(jax.random.normal(k4, (c,), jnp.float32))
        return (gamma, beta, mean, var)

    params = {
        "w1": 0.1 * jax.random.normal(ks[0], (planes, in_planes, 1, 1), jnp.float32),
        "bn1": bn_params(ks[1], planes),
        "w2": 0.1 * jax.random.normal(ks[2], (planes, planes, 3, 3), jnp.float32),
        "bn2": bn_params(ks[3], planes),
        "w3": 0.1 * jax.random.normal(ks[4], (out_planes, planes, 1, 1), jnp.float32),
        "bn3": bn_params(ks[5], out_planes),
    }
    if stride != 1 or in_planes != out_planes:
        params["w_sc"] = 0.1 * jax.random.normal(
            ks[6], (out_planes, in_planes, 1, 1), jnp.float32
        )
        params["bn_sc"] = bn_params(ks[7], out_planes)
    return params


if __name__ == "__main__":
    # Small shapes: batch=2, in_planes=8, planes=4 (out channels = 16),
    # spatial 8x8, stride=2 (exercises the projection shortcut).
    N, in_planes, planes, H, W, stride = 2, 8, 4, 8, 8, 2

    key = jax.random.PRNGKey(0)
    kx, kp = jax.random.split(key)
    x = jax.random.normal(kx, (N, in_planes, H, W), jnp.float32)  # NCHW, like PyTorch
    params = make_params(kp, in_planes, planes, stride)

    fwd = jax.jit(bottleneck_forward, static_argnums=2)
    out = jax.block_until_ready(fwd(x, params, stride))

    ref = jax.block_until_ready(ref_bottleneck(x, params, stride))
    assert out.shape == (N, EXPANSION * planes, H // stride, W // stride), out.shape
    # bf16 MXU inputs / bf16 inter-layer activations vs an f32 HIGHEST
    # reference -> relaxed tolerance.
    assert jnp.allclose(out, ref, rtol=5e-2, atol=5e-2), float(
        jnp.max(jnp.abs(out - ref))
    )

    print("KERNEL_OK")
</pallas_src>

<mosaic_0001>
module attributes {stable_mosaic.version = 11 : i64} {
  func.func @_fused_matmul_kernel(%arg0: i32, %arg1: i32, %arg2: i32, %arg3: memref<128x128xbf16, #tpu.memory_space<vmem>>, %arg4: memref<128x128xbf16, #tpu.memory_space<vmem>>, %arg5: memref<1x128xf32, #tpu.memory_space<vmem>>, %arg6: memref<128x128xbf16, #tpu.memory_space<vmem>>, %arg7: memref<128x128xf32, #tpu.memory_space<vmem>>) attributes {dimension_semantics = [#tpu.dimension_semantics<parallel>, #tpu.dimension_semantics<parallel>, #tpu.dimension_semantics<arbitrary>], iteration_bounds = array<i64: 1, 1, 1>, scalar_prefetch = 0 : i64, scratch_operands = 1 : i64, tpu.core_type = #tpu.core_type<tc>, window_params = [{transform_indices = @transform_0, window_bounds = array<i64: 128, 128>}, {transform_indices = @transform_1, window_bounds = array<i64: 128, 128>}, {transform_indices = @transform_2, window_bounds = array<i64: 1, 128>}, {transform_indices = @transform_3, window_bounds = array<i64: 128, 128>}]} {
    %c0_i32 = arith.constant 0 : i32
    %0 = arith.cmpi eq, %arg2, %c0_i32 : i32
    %1 = arith.extui %0 : i1 to i32
    %c0_i32_0 = arith.constant 0 : i32
    %2 = arith.cmpi ne, %1, %c0_i32_0 : i32
    scf.if %2 {
      %cst_10 = arith.constant 0.000000e+00 : f32
      %12 = vector.broadcast %cst_10 : f32 to vector<128x128xf32>
      %c0_11 = arith.constant 0 : index
      %c0_12 = arith.constant 0 : index
      %13 = vector.load %arg7[%c0_11, %c0_12] : memref<128x128xf32, #tpu.memory_space<vmem>>, vector<128x128xf32>
      tpu.vector_store %arg7[%c0_11, %c0_12], %12 {strides = array<i32>} : memref<128x128xf32, #tpu.memory_space<vmem>>, vector<128x128xf32>,
    } else {
    }
    %c0 = arith.constant 0 : index
    %c0_1 = arith.constant 0 : index
    %3 = vector.load %arg7[%c0, %c0_1] : memref<128x128xf32, #tpu.memory_space<vmem>>, vector<128x128xf32>
    %c0_2 = arith.constant 0 : index
    %c0_3 = arith.constant 0 : index
    %4 = vector.load %arg3[%c0_2, %c0_3] : memref<128x128xbf16, #tpu.memory_space<vmem>>, vector<128x128xbf16>
    %c0_4 = arith.constant 0 : index
    %c0_5 = arith.constant 0 : index
    %5 = vector.load %arg4[%c0_4, %c0_5] : memref<128x128xbf16, #tpu.memory_space<vmem>>, vector<128x128xbf16>
    %cst = arith.constant dense<0.000000e+00> : vector<128x128xf32>
    %6 = tpu.matmul %4, %5, %cst {dimension_numbers = #tpu.dot_dimension_numbers<[1], [0], [0], [1], [0, 0, 1, 1], [], []>} : vector<128x128xbf16>, vector<128x128xbf16>, vector<128x128xf32> -> vector<128x128xf32>
    %7 = arith.addf %3, %6 : vector<128x128xf32>
    %c0_6 = arith.constant 0 : index
    %c0_7 = arith.constant 0 : index
    %8 = vector.load %arg7[%c0_6, %c0_7] : memref<128x128xf32, #tpu.memory_space<vmem>>, vector<128x128xf32>
    tpu.vector_store %arg7[%c0_6, %c0_7], %7 {strides = array<i32>} : memref<128x128xf32, #tpu.memory_space<vmem>>, vector<128x128xf32>,
    %c0_i32_8 = arith.constant 0 : i32
    %9 = arith.cmpi eq, %arg2, %c0_i32_8 : i32
    %10 = arith.extui %9 : i1 to i32
    %c0_i32_9 = arith.constant 0 : i32
    %11 = arith.cmpi ne, %10, %c0_i32_9 : i32
    scf.if %11 {
      %c0_10 = arith.constant 0 : index
      %c0_11 = arith.constant 0 : index
      %12 = vector.load %arg7[%c0_10, %c0_11] : memref<128x128xf32, #tpu.memory_space<vmem>>, vector<128x128xf32>
      %c0_12 = arith.constant 0 : index
      %c0_13 = arith.constant 0 : index
      %13 = vector.load %arg5[%c0_12, %c0_13] : memref<1x128xf32, #tpu.memory_space<vmem>>, vector<1x128xf32>
      %14 = vector.broadcast %13 : vector<1x128xf32> to vector<128x128xf32>
      %15 = arith.addf %12, %14 : vector<128x128xf32>
      %cst_14 = arith.constant 0.000000e+00 : f32
      %16 = vector.broadcast %cst_14 : f32 to vector<128x128xf32>
      %17 = arith.maximumf %15, %16 : vector<128x128xf32>
      %18 = arith.truncf %17 : vector<128x128xf32> to vector<128x128xbf16>
      %c0_15 = arith.constant 0 : index
      %c0_16 = arith.constant 0 : index
      %19 = vector.load %arg6[%c0_15, %c0_16] : memref<128x128xbf16, #tpu.memory_space<vmem>>, vector<128x128xbf16>
      tpu.vector_store %arg6[%c0_15, %c0_16], %18 {strides = array<i32>} : memref<128x128xbf16, #tpu.memory_space<vmem>>, vector<128x128xbf16>,
    } else {
    }
    return
  }
  func.func @transform_0(%arg0: i32, %arg1: i32, %arg2: i32) -> (i32, i32) {
    %c0_i32 = arith.constant 0 : i32
    return %arg0, %arg2 : i32, i32
  }
  func.func @transform_1(%arg0: i32, %arg1: i32, %arg2: i32) -> (i32, i32) {
    %c0_i32 = arith.constant 0 : i32
    return %arg2, %arg1 : i32, i32
  }
  func.func @transform_2(%arg0: i32, %arg1: i32, %arg2: i32) -> (i32, i32) {
    %c0_i32 = arith.constant 0 : i32
    %c0_i32_0 = arith.constant 0 : i32
    return %c0_i32, %arg1 : i32, i32
  }
  func.func @transform_3(%arg0: i32, %arg1: i32, %arg2: i32) -> (i32, i32) {
    %c0_i32 = arith.constant 0 : i32
    return %arg0, %arg1 : i32, i32
  }
}

module attributes {stable_mosaic.version = 11 : i64} {
  func.func @_fused_matmul_kernel(%arg0: i32, %arg1: i32, %arg2: i32, %arg3: memref<32x128xbf16, #tpu.memory_space<vmem>>, %arg4: memref<128x128xbf16, #tpu.memory_space<vmem>>, %arg5: memref<1x128xf32, #tpu.memory_space<vmem>>, %arg6: memref<32x128xbf16, #tpu.memory_space<vmem>>, %arg7: memref<32x128xf32, #tpu.memory_space<vmem>>) attributes {dimension_semantics = [#tpu.dimension_semantics<parallel>, #tpu.dimension_semantics<parallel>, #tpu.dimension_semantics<arbitrary>], iteration_bounds = array<i64: 1, 1, 1>, scalar_prefetch = 0 : i64, scratch_operands = 1 : i64, tpu.core_type = #tpu.core_type<tc>, window_params = [{transform_indices = @transform_0, window_bounds = array<i64: 32, 128>}, {transform_indices = @transform_1, window_bounds = array<i64: 128, 128>}, {transform_indices = @transform_2, window_bounds = array<i64: 1, 128>}, {transform_indices = @transform_3, window_bounds = array<i64: 32, 128>}]} {
    %c0_i32 = arith.constant 0 : i32
    %0 = arith.cmpi eq, %arg2, %c0_i32 : i32
    %1 = arith.extui %0 : i1 to i32
    %c0_i32_0 = arith.constant 0 : i32
    %2 = arith.cmpi ne, %1, %c0_i32_0 : i32
    scf.if %2 {
      %cst_10 = arith.constant 0.000000e+00 : f32
      %12 = vector.broadcast %cst_10 : f32 to vector<32x128xf32>
      %c0_11 = arith.constant 0 : index
      %c0_12 = arith.constant 0 : index
      %13 = vector.load %arg7[%c0_11, %c0_12] : memref<32x128xf32, #tpu.memory_space<vmem>>, vector<32x128xf32>
      tpu.vector_store %arg7[%c0_11, %c0_12], %12 {strides = array<i32>} : memref<32x128xf32, #tpu.memory_space<vmem>>, vector<32x128xf32>,
    } else {
    }
    %c0 = arith.constant 0 : index
    %c0_1 = arith.constant 0 : index
    %3 = vector.load %arg7[%c0, %c0_1] : memref<32x128xf32, #tpu.memory_space<vmem>>, vector<32x128xf32>
    %c0_2 = arith.constant 0 : index
    %c0_3 = arith.constant 0 : index
    %4 = vector.load %arg3[%c0_2, %c0_3] : memref<32x128xbf16, #tpu.memory_space<vmem>>, vector<32x128xbf16>
    %c0_4 = arith.constant 0 : index
    %c0_5 = arith.constant 0 : index
    %5 = vector.load %arg4[%c0_4, %c0_5] : memref<128x128xbf16, #tpu.memory_space<vmem>>, vector<128x128xbf16>
    %cst = arith.constant dense<0.000000e+00> : vector<32x128xf32>
    %6 = tpu.matmul %4, %5, %cst {dimension_numbers = #tpu.dot_dimension_numbers<[1], [0], [0], [1], [0, 0, 1, 1], [], []>} : vector<32x128xbf16>, vector<128x128xbf16>, vector<32x128xf32> -> vector<32x128xf32>
    %7 = arith.addf %3, %6 : vector<32x128xf32>
    %c0_6 = arith.constant 0 : index
    %c0_7 = arith.constant 0 : index
    %8 = vector.load %arg7[%c0_6, %c0_7] : memref<32x128xf32, #tpu.memory_space<vmem>>, vector<32x128xf32>
    tpu.vector_store %arg7[%c0_6, %c0_7], %7 {strides = array<i32>} : memref<32x128xf32, #tpu.memory_space<vmem>>, vector<32x128xf32>,
    %c0_i32_8 = arith.constant 0 : i32
    %9 = arith.cmpi eq, %arg2, %c0_i32_8 : i32
    %10 = arith.extui %9 : i1 to i32
    %c0_i32_9 = arith.constant 0 : i32
    %11 = arith.cmpi ne, %10, %c0_i32_9 : i32
    scf.if %11 {
      %c0_10 = arith.constant 0 : index
      %c0_11 = arith.constant 0 : index
      %12 = vector.load %arg7[%c0_10, %c0_11] : memref<32x128xf32, #tpu.memory_space<vmem>>, vector<32x128xf32>
      %c0_12 = arith.constant 0 : index
      %c0_13 = arith.constant 0 : index
      %13 = vector.load %arg5[%c0_12, %c0_13] : memref<1x128xf32, #tpu.memory_space<vmem>>, vector<1x128xf32>
      %14 = vector.broadcast %13 : vector<1x128xf32> to vector<32x128xf32>
      %15 = arith.addf %12, %14 : vector<32x128xf32>
      %cst_14 = arith.constant 0.000000e+00 : f32
      %16 = vector.broadcast %cst_14 : f32 to vector<32x128xf32>
      %17 = arith.maximumf %15, %16 : vector<32x128xf32>
      %18 = arith.truncf %17 : vector<32x128xf32> to vector<32x128xbf16>
      %c0_15 = arith.constant 0 : index
      %c0_16 = arith.constant 0 : index
      %19 = vector.load %arg6[%c0_15, %c0_16] : memref<32x128xbf16, #tpu.memory_space<vmem>>, vector<32x128xbf16>
      tpu.vector_store %arg6[%c0_15, %c0_16], %18 {strides = array<i32>} : memref<32x128xbf16, #tpu.memory_space<vmem>>, vector<32x128xbf16>,
    } else {
    }
    return
  }
  func.func @transform_0(%arg0: i32, %arg1: i32, %arg2: i32) -> (i32, i32) {
    %c0_i32 = arith.constant 0 : i32
    return %arg0, %arg2 : i32, i32
  }
  func.func @transform_1(%arg0: i32, %arg1: i32, %arg2: i32) -> (i32, i32) {
    %c0_i32 = arith.constant 0 : i32
    return %arg2, %arg1 : i32, i32
  }
  func.func @transform_2(%arg0: i32, %arg1: i32, %arg2: i32) -> (i32, i32) {
    %c0_i32 = arith.constant 0 : i32
    %c0_i32_0 = arith.constant 0 : i32
    return %c0_i32, %arg1 : i32, i32
  }
  func.func @transform_3(%arg0: i32, %arg1: i32, %arg2: i32) -> (i32, i32) {
    %c0_i32 = arith.constant 0 : i32
    return %arg0, %arg1 : i32, i32
  }
}

module attributes {stable_mosaic.version = 11 : i64} {
  func.func @_fused_matmul_kernel(%arg0: i32, %arg1: i32, %arg2: i32, %arg3: memref<32x128xbf16, #tpu.memory_space<vmem>>, %arg4: memref<128x128xbf16, #tpu.memory_space<vmem>>, %arg5: memref<1x128xf32, #tpu.memory_space<vmem>>, %arg6: memref<32x128xbf16, #tpu.memory_space<vmem>>, %arg7: memref<32x128xf32, #tpu.memory_space<vmem>>) attributes {dimension_semantics = [#tpu.dimension_semantics<parallel>, #tpu.dimension_semantics<parallel>, #tpu.dimension_semantics<arbitrary>], iteration_bounds = array<i64: 1, 1, 1>, scalar_prefetch = 0 : i64, scratch_operands = 1 : i64, tpu.core_type = #tpu.core_type<tc>, window_params = [{transform_indices = @transform_0, window_bounds = array<i64: 32, 128>}, {transform_indices = @transform_1, window_bounds = array<i64: 128, 128>}, {transform_indices = @transform_2, window_bounds = array<i64: 1, 128>}, {transform_indices = @transform_3, window_bounds = array<i64: 32, 128>}]} {
    %c0_i32 = arith.constant 0 : i32
    %0 = arith.cmpi eq, %arg2, %c0_i32 : i32
    %1 = arith.extui %0 : i1 to i32
    %c0_i32_0 = arith.constant 0 : i32
    %2 = arith.cmpi ne, %1, %c0_i32_0 : i32
    scf.if %2 {
      %cst_10 = arith.constant 0.000000e+00 : f32
      %12 = vector.broadcast %cst_10 : f32 to vector<32x128xf32>
      %c0_11 = arith.constant 0 : index
      %c0_12 = arith.constant 0 : index
      %13 = vector.load %arg7[%c0_11, %c0_12] : memref<32x128xf32, #tpu.memory_space<vmem>>, vector<32x128xf32>
      tpu.vector_store %arg7[%c0_11, %c0_12], %12 {strides = array<i32>} : memref<32x128xf32, #tpu.memory_space<vmem>>, vector<32x128xf32>,
    } else {
    }
    %c0 = arith.constant 0 : index
    %c0_1 = arith.constant 0 : index
    %3 = vector.load %arg7[%c0, %c0_1] : memref<32x128xf32, #tpu.memory_space<vmem>>, vector<32x128xf32>
    %c0_2 = arith.constant 0 : index
    %c0_3 = arith.constant 0 : index
    %4 = vector.load %arg3[%c0_2, %c0_3] : memref<32x128xbf16, #tpu.memory_space<vmem>>, vector<32x128xbf16>
    %c0_4 = arith.constant 0 : index
    %c0_5 = arith.constant 0 : index
    %5 = vector.load %arg4[%c0_4, %c0_5] : memref<128x128xbf16, #tpu.memory_space<vmem>>, vector<128x128xbf16>
    %cst = arith.constant dense<0.000000e+00> : vector<32x128xf32>
    %6 = tpu.matmul %4, %5, %cst {dimension_numbers = #tpu.dot_dimension_numbers<[1], [0], [0], [1], [0, 0, 1, 1], [], []>} : vector<32x128xbf16>, vector<128x128xbf16>, vector<32x128xf32> -> vector<32x128xf32>
    %7 = arith.addf %3, %6 : vector<32x128xf32>
    %c0_6 = arith.constant 0 : index
    %c0_7 = arith.constant 0 : index
    %8 = vector.load %arg7[%c0_6, %c0_7] : memref<32x128xf32, #tpu.memory_space<vmem>>, vector<32x128xf32>
    tpu.vector_store %arg7[%c0_6, %c0_7], %7 {strides = array<i32>} : memref<32x128xf32, #tpu.memory_space<vmem>>, vector<32x128xf32>,
    %c0_i32_8 = arith.constant 0 : i32
    %9 = arith.cmpi eq, %arg2, %c0_i32_8 : i32
    %10 = arith.extui %9 : i1 to i32
    %c0_i32_9 = arith.constant 0 : i32
    %11 = arith.cmpi ne, %10, %c0_i32_9 : i32
    scf.if %11 {
      %c0_10 = arith.constant 0 : index
      %c0_11 = arith.constant 0 : index
      %12 = vector.load %arg7[%c0_10, %c0_11] : memref<32x128xf32, #tpu.memory_space<vmem>>, vector<32x128xf32>
      %c0_12 = arith.constant 0 : index
      %c0_13 = arith.constant 0 : index
      %13 = vector.load %arg5[%c0_12, %c0_13] : memref<1x128xf32, #tpu.memory_space<vmem>>, vector<1x128xf32>
      %14 = vector.broadcast %13 : vector<1x128xf32> to vector<32x128xf32>
      %15 = arith.addf %12, %14 : vector<32x128xf32>
      %16 = arith.truncf %15 : vector<32x128xf32> to vector<32x128xbf16>
      %c0_14 = arith.constant 0 : index
      %c0_15 = arith.constant 0 : index
      %17 = vector.load %arg6[%c0_14, %c0_15] : memref<32x128xbf16, #tpu.memory_space<vmem>>, vector<32x128xbf16>
      tpu.vector_store %arg6[%c0_14, %c0_15], %16 {strides = array<i32>} : memref<32x128xbf16, #tpu.memory_space<vmem>>, vector<32x128xbf16>,
    } else {
    }
    return
  }
  func.func @transform_0(%arg0: i32, %arg1: i32, %arg2: i32) -> (i32, i32) {
    %c0_i32 = arith.constant 0 : i32
    return %arg0, %arg2 : i32, i32
  }
  func.func @transform_1(%arg0: i32, %arg1: i32, %arg2: i32) -> (i32, i32) {
    %c0_i32 = arith.constant 0 : i32
    return %arg2, %arg1 : i32, i32
  }
  func.func @transform_2(%arg0: i32, %arg1: i32, %arg2: i32) -> (i32, i32) {
    %c0_i32 = arith.constant 0 : i32
    %c0_i32_0 = arith.constant 0 : i32
    return %c0_i32, %arg1 : i32, i32
  }
  func.func @transform_3(%arg0: i32, %arg1: i32, %arg2: i32) -> (i32, i32) {
    %c0_i32 = arith.constant 0 : i32
    return %arg0, %arg1 : i32, i32
  }
}

module attributes {stable_mosaic.version = 11 : i64} {
  func.func @_fused_matmul_kernel(%arg0: i32, %arg1: i32, %arg2: i32, %arg3: memref<32x128xbf16, #tpu.memory_space<vmem>>, %arg4: memref<128x128xbf16, #tpu.memory_space<vmem>>, %arg5: memref<1x128xf32, #tpu.memory_space<vmem>>, %arg6: memref<32x128xbf16, #tpu.memory_space<vmem>>, %arg7: memref<32x128xf32, #tpu.memory_space<vmem>>, %arg8: memref<32x128xf32, #tpu.memory_space<vmem>>) attributes {dimension_semantics = [#tpu.dimension_semantics<parallel>, #tpu.dimension_semantics<parallel>, #tpu.dimension_semantics<arbitrary>], iteration_bounds = array<i64: 1, 1, 1>, scalar_prefetch = 0 : i64, scratch_operands = 1 : i64, tpu.core_type = #tpu.core_type<tc>, window_params = [{transform_indices = @transform_0, window_bounds = array<i64: 32, 128>}, {transform_indices = @transform_1, window_bounds = array<i64: 128, 128>}, {transform_indices = @transform_2, window_bounds = array<i64: 1, 128>}, {transform_indices = @transform_3, window_bounds = array<i64: 32, 128>}, {transform_indices = @transform_4, window_bounds = array<i64: 32, 128>}]} {
    %c0_i32 = arith.constant 0 : i32
    %0 = arith.cmpi eq, %arg2, %c0_i32 : i32
    %1 = arith.extui %0 : i1 to i32
    %c0_i32_0 = arith.constant 0 : i32
    %2 = arith.cmpi ne, %1, %c0_i32_0 : i32
    scf.if %2 {
      %cst_10 = arith.constant 0.000000e+00 : f32
      %12 = vector.broadcast %cst_10 : f32 to vector<32x128xf32>
      %c0_11 = arith.constant 0 : index
      %c0_12 = arith.constant 0 : index
      %13 = vector.load %arg8[%c0_11, %c0_12] : memref<32x128xf32, #tpu.memory_space<vmem>>, vector<32x128xf32>
      tpu.vector_store %arg8[%c0_11, %c0_12], %12 {strides = array<i32>} : memref<32x128xf32, #tpu.memory_space<vmem>>, vector<32x128xf32>,
    } else {
    }
    %c0 = arith.constant 0 : index
    %c0_1 = arith.constant 0 : index
    %3 = vector.load %arg8[%c0, %c0_1] : memref<32x128xf32, #tpu.memory_space<vmem>>, vector<32x128xf32>
    %c0_2 = arith.constant 0 : index
    %c0_3 = arith.constant 0 : index
    %4 = vector.load %arg3[%c0_2, %c0_3] : memref<32x128xbf16, #tpu.memory_space<vmem>>, vector<32x128xbf16>
    %c0_4 = arith.constant 0 : index
    %c0_5 = arith.constant 0 : index
    %5 = vector.load %arg4[%c0_4, %c0_5] : memref<128x128xbf16, #tpu.memory_space<vmem>>, vector<128x128xbf16>
    %cst = arith.constant dense<0.000000e+00> : vector<32x128xf32>
    %6 = tpu.matmul %4, %5, %cst {dimension_numbers = #tpu.dot_dimension_numbers<[1], [0], [0], [1], [0, 0, 1, 1], [], []>} : vector<32x128xbf16>, vector<128x128xbf16>, vector<32x128xf32> -> vector<32x128xf32>
    %7 = arith.addf %3, %6 : vector<32x128xf32>
    %c0_6 = arith.constant 0 : index
    %c0_7 = arith.constant 0 : index
    %8 = vector.load %arg8[%c0_6, %c0_7] : memref<32x128xf32, #tpu.memory_space<vmem>>, vector<32x128xf32>
    tpu.vector_store %arg8[%c0_6, %c0_7], %7 {strides = array<i32>} : memref<32x128xf32, #tpu.memory_space<vmem>>, vector<32x128xf32>,
    %c0_i32_8 = arith.constant 0 : i32
    %9 = arith.cmpi eq, %arg2, %c0_i32_8 : i32
    %10 = arith.extui %9 : i1 to i32
    %c0_i32_9 = arith.constant 0 : i32
    %11 = arith.cmpi ne, %10, %c0_i32_9 : i32
    scf.if %11 {
      %c0_10 = arith.constant 0 : index
      %c0_11 = arith.constant 0 : index
      %12 = vector.load %arg8[%c0_10, %c0_11] : memref<32x128xf32, #tpu.memory_space<vmem>>, vector<32x128xf32>
      %c0_12 = arith.constant 0 : index
      %c0_13 = arith.constant 0 : index
      %13 = vector.load %arg5[%c0_12, %c0_13] : memref<1x128xf32, #tpu.memory_space<vmem>>, vector<1x128xf32>
      %14 = vector.broadcast %13 : vector<1x128xf32> to vector<32x128xf32>
      %15 = arith.addf %12, %14 : vector<32x128xf32>
      %c0_14 = arith.constant 0 : index
      %c0_15 = arith.constant 0 : index
      %16 = vector.load %arg6[%c0_14, %c0_15] : memref<32x128xbf16, #tpu.memory_space<vmem>>, vector<32x128xbf16>
      %17 = arith.extf %16 : vector<32x128xbf16> to vector<32x128xf32>
      %18 = arith.addf %15, %17 : vector<32x128xf32>
      %cst_16 = arith.constant 0.000000e+00 : f32
      %19 = vector.broadcast %cst_16 : f32 to vector<32x128xf32>
      %20 = arith.maximumf %18, %19 : vector<32x128xf32>
      %c0_17 = arith.constant 0 : index
      %c0_18 = arith.constant 0 : index
      %21 = vector.load %arg7[%c0_17, %c0_18] : memref<32x128xf32, #tpu.memory_space<vmem>>, vector<32x128xf32>
      tpu.vector_store %arg7[%c0_17, %c0_18], %20 {strides = array<i32>} : memref<32x128xf32, #tpu.memory_space<vmem>>, vector<32x128xf32>,
    } else {
    }
    return
  }
  func.func @transform_0(%arg0: i32, %arg1: i32, %arg2: i32) -> (i32, i32) {
    %c0_i32 = arith.constant 0 : i32
    return %arg0, %arg2 : i32, i32
  }
  func.func @transform_1(%arg0: i32, %arg1: i32, %arg2: i32) -> (i32, i32) {
    %c0_i32 = arith.constant 0 : i32
    return %arg2, %arg1 : i32, i32
  }
  func.func @transform_2(%arg0: i32, %arg1: i32, %arg2: i32) -> (i32, i32) {
    %c0_i32 = arith.constant 0 : i32
    %c0_i32_0 = arith.constant 0 : i32
    return %c0_i32, %arg1 : i32, i32
  }
  func.func @transform_3(%arg0: i32, %arg1: i32, %arg2: i32) -> (i32, i32) {
    %c0_i32 = arith.constant 0 : i32
    return %arg0, %arg1 : i32, i32
  }
  func.func @transform_4(%arg0: i32, %arg1: i32, %arg2: i32) -> (i32, i32) {
    %c0_i32 = arith.constant 0 : i32
    return %arg0, %arg1 : i32, i32
  }
}

</mosaic_0001>

<llo_original>
// kernel: bottleneck_forward.5
$region0: #{bottleneck_forward.5}
  #allocation0 [shape = 'u32[]', space=smem, size = 0x4, offset = 0x4, fixed_abs, tag = 'smem constant byte address 0x4 - core index']
  #allocation1 [shape = 'u32[72,128]{1,0:T(1,128)}', space=vmem, size = 0x9000, scoped, tag = 'internal scratch']
  #allocation2 [shape = 'f32[128,128]{1,0:T(8,128)}', space=vmem, size = 0x10000, scoped, tag = 'scratch operand']
  %s0 = inlined_call_operand.vmem [shape: bf16[128,128], index: 0, kind: input, shape index: {}]
  %s1 = inlined_call_operand.vmem [shape: bf16[128,128], index: 1, kind: input, shape index: {}]
  %s2 = inlined_call_operand.vmem [shape: f32[1,128], index: 2, kind: input, shape index: {}]
  %s3 = inlined_call_operand.vmem [shape: bf16[128,128], index: 3, kind: output, shape index: {}]
  %s4 = sld [smem:[#allocation0]]
  $region30: #{bottleneck_forward.5} parent=0
    _
  %s6 = ssub.s32 1, %s4
  %s7 = scalar_select 0, %s6, %s4
  // Predicated region
  $region2: #{bottleneck_forward.5} parent=0 // pred_check
    _
  $region3: #{bottleneck_forward.5} parent=0 // pred_check_branch
    %9 = sbr.rel (0) target = $region5
  $region4: #{bottleneck_forward.5} parent=0 // pred_region
    _
  $region5: #{bottleneck_forward.5} parent=0 // pred_fallthru
    _
  // Predicated region
  $region6: #{bottleneck_forward.5} parent=0 // pred_check
    _
  $region7: #{bottleneck_forward.5} parent=0 // pred_check_branch
    %11 = sbr.rel (0) target = $region9
  $region8: #{bottleneck_forward.5} parent=0 // pred_region
    _
  $region9: #{bottleneck_forward.5} parent=0 // pred_fallthru
    _
  // Predicated region
  $region10: #{bottleneck_forward.5} parent=0 // pred_check
    _
  $region11: #{bottleneck_forward.5} parent=0 // pred_check_branch
    %13 = sbr.rel (0) target = $region13
  $region12: #{bottleneck_forward.5} parent=0 // pred_region
    _
  $region13: #{bottleneck_forward.5} parent=0 // pred_fallthru
    _
  %p14 = scmp.eq.s32.totalorder 0, 0
  // Predicated region
  $region14: #{bottleneck_forward.5} parent=0 // pred_check
    %p15 = pneg %p14
  $region15: #{bottleneck_forward.5} parent=0 // pred_check_branch
    %17 = sbr.rel (%p15) target = $region17
  $region16: #{bottleneck_forward.5} parent=0 // pred_region
    %18 = vst [vmem:[#allocation2] sm:$0xff] 0.0
    %19 = vst [vmem:[#allocation2 + $0x8] sm:$0xff] 0.0
    %20 = vst [vmem:[#allocation2 + $0x10] sm:$0xff] 0.0
    %21 = vst [vmem:[#allocation2 + $0x18] sm:$0xff] 0.0
    %22 = vst [vmem:[#allocation2 + $0x20] sm:$0xff] 0.0
    %23 = vst [vmem:[#allocation2 + $0x28] sm:$0xff] 0.0
    %24 = vst [vmem:[#allocation2 + $0x30] sm:$0xff] 0.0
    %25 = vst [vmem:[#allocation2 + $0x38] sm:$0xff] 0.0
    %26 = vst [vmem:[#allocation2 + $0x40] sm:$0xff] 0.0
    %27 = vst [vmem:[#allocation2 + $0x48] sm:$0xff] 0.0
    %28 = vst [vmem:[#allocation2 + $0x50] sm:$0xff] 0.0
    %29 = vst [vmem:[#allocation2 + $0x58] sm:$0xff] 0.0
    %30 = vst [vmem:[#allocation2 + $0x60] sm:$0xff] 0.0
    %31 = vst [vmem:[#allocation2 + $0x68] sm:$0xff] 0.0
    %32 = vst [vmem:[#allocation2 + $0x70] sm:$0xff] 0.0
    %33 = vst [vmem:[#allocation2 + $0x78] sm:$0xff] 0.0
  $region17: #{bottleneck_forward.5} parent=0 // pred_fallthru
    _
  %v34 = vld [vmem:[#allocation2] sm:$0xff]
  %v35 = vld [vmem:[#allocation2 + $0x8] sm:$0xff]
  %v36 = vld [vmem:[#allocation2 + $0x10] sm:$0xff]
  %v37 = vld [vmem:[#allocation2 + $0x18] sm:$0xff]
  %v38 = vld [vmem:[#allocation2 + $0x20] sm:$0xff]
  %v39 = vld [vmem:[#allocation2 + $0x28] sm:$0xff]
  %v40 = vld [vmem:[#allocation2 + $0x30] sm:$0xff]
  %v41 = vld [vmem:[#allocation2 + $0x38] sm:$0xff]
  %v42 = vld [vmem:[#allocation2 + $0x40] sm:$0xff]
  %v43 = vld [vmem:[#allocation2 + $0x48] sm:$0xff]
  %v44 = vld [vmem:[#allocation2 + $0x50] sm:$0xff]
  %v45 = vld [vmem:[#allocation2 + $0x58] sm:$0xff]
  %v46 = vld [vmem:[#allocation2 + $0x60] sm:$0xff]
  %v47 = vld [vmem:[#allocation2 + $0x68] sm:$0xff]
  %v48 = vld [vmem:[#allocation2 + $0x70] sm:$0xff]
  %v49 = vld [vmem:[#allocation2 + $0x78] sm:$0xff]
  %v50 = vld [vmem:[%s0] sm:$0xf]
  %v51 = vld [vmem:[%s0 + $0x4] sm:$0xf]
  %v52 = vld [vmem:[%s0 + $0x8] sm:$0xf]
  %v53 = vld [vmem:[%s0 + $0xc] sm:$0xf]
  %v54 = vld [vmem:[%s0 + $0x10] sm:$0xf]
  %v55 = vld [vmem:[%s0 + $0x14] sm:$0xf]
  %v56 = vld [vmem:[%s0 + $0x18] sm:$0xf]
  %v57 = vld [vmem:[%s0 + $0x1c] sm:$0xf]
  %v58 = vld [vmem:[%s0 + $0x20] sm:$0xf]
  %v59 = vld [vmem:[%s0 + $0x24] sm:$0xf]
  %v60 = vld [vmem:[%s0 + $0x28] sm:$0xf]
  %v61 = vld [vmem:[%s0 + $0x2c] sm:$0xf]
  %v62 = vld [vmem:[%s0 + $0x30] sm:$0xf]
  %v63 = vld [vmem:[%s0 + $0x34] sm:$0xf]
  %v64 = vld [vmem:[%s0 + $0x38] sm:$0xf]
  %v65 = vld [vmem:[%s0 + $0x3c] sm:$0xf]
  %v66 = vld [vmem:[%s1] sm:$0xf]
  %v67 = vld [vmem:[%s1 + $0x4] sm:$0xf]
  %v68 = vld [vmem:[%s1 + $0x8] sm:$0xf]
  %v69 = vld [vmem:[%s1 + $0xc] sm:$0xf]
  %v70 = vld [vmem:[%s1 + $0x10] sm:$0xf]
  %v71 = vld [vmem:[%s1 + $0x14] sm:$0xf]
  %v72 = vld [vmem:[%s1 + $0x18] sm:$0xf]
  %v73 = vld [vmem:[%s1 + $0x1c] sm:$0xf]
  %v74 = vld [vmem:[%s1 + $0x20] sm:$0xf]
  %v75 = vld [vmem:[%s1 + $0x24] sm:$0xf]
  %v76 = vld [vmem:[%s1 + $0x28] sm:$0xf]
  %v77 = vld [vmem:[%s1 + $0x2c] sm:$0xf]
  %v78 = vld [vmem:[%s1 + $0x30] sm:$0xf]
  %v79 = vld [vmem:[%s1 + $0x34] sm:$0xf]
  %v80 = vld [vmem:[%s1 + $0x38] sm:$0xf]
  %v81 = vld [vmem:[%s1 + $0x3c] sm:$0xf]
  %v98 = vunpack.c.l.b16 %v50
  %v99 = vunpack.c.l.b16 %v51
  %v100 = vunpack.c.l.b16 %v52
  %v101 = vunpack.c.l.b16 %v53
  %v102 = vunpack.c.l.b16 %v54
  %v103 = vunpack.c.l.b16 %v55
  %v104 = vunpack.c.l.b16 %v56
  %v105 = vunpack.c.l.b16 %v57
  %v106 = vunpack.c.l.b16 %v58
  %v107 = vunpack.c.l.b16 %v59
  %v108 = vunpack.c.l.b16 %v60
  %v109 = vunpack.c.l.b16 %v61
  %v110 = vunpack.c.l.b16 %v62
  %v111 = vunpack.c.l.b16 %v63
  %v112 = vunpack.c.l.b16 %v64
  %v113 = vunpack.c.l.b16 %v65
  %v114 = vpack.c.b16 %v99, %v98
  %v115 = vpack.c.b16 %v101, %v100
  %v116 = vpack.c.b16 %v103, %v102
  %v117 = vpack.c.b16 %v105, %v104
  %v118 = vpack.c.b16 %v107, %v106
  %v119 = vpack.c.b16 %v109, %v108
  %v120 = vpack.c.b16 %v111, %v110
  %v121 = vpack.c.b16 %v113, %v112
  %v146 = vunpack.c.l.b16 %v66
  %v147 = vunpack.c.l.b16 %v67
  %v148 = vunpack.c.l.b16 %v68
  %v149 = vunpack.c.l.b16 %v69
  %v150 = vunpack.c.l.b16 %v70
  %v151 = vunpack.c.l.b16 %v71
  %v152 = vunpack.c.l.b16 %v72
  %v153 = vunpack.c.l.b16 %v73
  %v154 = vunpack.c.l.b16 %v74
  %v155 = vunpack.c.l.b16 %v75
  %v156 = vunpack.c.l.b16 %v76
  %v157 = vunpack.c.l.b16 %v77
  %v158 = vunpack.c.l.b16 %v78
  %v159 = vunpack.c.l.b16 %v79
  %v160 = vunpack.c.l.b16 %v80
  %v161 = vunpack.c.l.b16 %v81
  %v162 = vpack.c.b16 %v147, %v146
  %v163 = vpack.c.b16 %v149, %v148
  %v164 = vpack.c.b16 %v151, %v150
  %v165 = vpack.c.b16 %v153, %v152
  %v166 = vpack.c.b16 %v155, %v154
  %v167 = vpack.c.b16 %v157, %v156
  %v168 = vpack.c.b16 %v159, %v158
  %v169 = vpack.c.b16 %v161, %v160
  %178 = vmatpush.bf16.msra.mxu0 %v169
  %179 = vmatpush.bf16.msra.mxu0 %v168
  %180 = vmatpush.bf16.msra.mxu0 %v167
  %181 = vmatpush.bf16.msra.mxu0 %v166
  %182 = vmatpush.bf16.msra.mxu0 %v165
  %183 = vmatpush.bf16.msra.mxu0 %v164
  %184 = vmatpush.bf16.msra.mxu0 %v163
  %185 = vmatpush.bf16.msra.mxu0 %v162
  %186 = vmatmul.bf16.gmra.mxu0 %v114
  %v187 = vpop.f32.mrf.mxu0
  %v188 = vadd.f32 0.0, %v187
  %v189 = vpop.f32.mrf.mxu0
  %v190 = vadd.f32 0.0, %v189
  %191 = vmatmul.bf16.gmra.mxu0 %v115
  %v192 = vpop.f32.mrf.mxu0
  %v193 = vadd.f32 0.0, %v192
  %v194 = vpop.f32.mrf.mxu0
  %v195 = vadd.f32 0.0, %v194
  %196 = vmatmul.bf16.gmra.mxu0 %v116
  %v197 = vpop.f32.mrf.mxu0
  %v198 = vadd.f32 0.0, %v197
  %v199 = vpop.f32.mrf.mxu0
  %v200 = vadd.f32 0.0, %v199
  %201 = vmatmul.bf16.gmra.mxu0 %v117
  %v202 = vpop.f32.mrf.mxu0
  %v203 = vadd.f32 0.0, %v202
  %v204 = vpop.f32.mrf.mxu0
  %v205 = vadd.f32 0.0, %v204
  %206 = vmatmul.bf16.gmra.mxu0 %v118
  %v207 = vpop.f32.mrf.mxu0
  %v208 = vadd.f32 0.0, %v207
  %v209 = vpop.f32.mrf.mxu0
  %v210 = vadd.f32 0.0, %v209
  %211 = vmatmul.bf16.gmra.mxu0 %v119
  %v212 = vpop.f32.mrf.mxu0
  %v213 = vadd.f32 0.0, %v212
  %v214 = vpop.f32.mrf.mxu0
  %v215 = vadd.f32 0.0, %v214
  %216 = vmatmul.bf16.gmra.mxu0 %v120
  %v217 = vpop.f32.mrf.mxu0
  %v218 = vadd.f32 0.0, %v217
  %v219 = vpop.f32.mrf.mxu0
  %v220 = vadd.f32 0.0, %v219
  %221 = vmatmul.bf16.gmra.mxu0 %v121
  %v222 = vpop.f32.mrf.mxu0
  %v223 = vadd.f32 0.0, %v222
  %v224 = vpop.f32.mrf.mxu0
  %v225 = vadd.f32 0.0, %v224
  %226 = vdwg.mxu0
  %v227 = vadd.f32 %v34, %v188
  %v228 = vadd.f32 %v35, %v190
  %v229 = vadd.f32 %v36, %v193
  %v230 = vadd.f32 %v37, %v195
  %v231 = vadd.f32 %v38, %v198
  %v232 = vadd.f32 %v39, %v200
  %v233 = vadd.f32 %v40, %v203
  %v234 = vadd.f32 %v41, %v205
  %v235 = vadd.f32 %v42, %v208
  %v236 = vadd.f32 %v43, %v210
  %v237 = vadd.f32 %v44, %v213
  %v238 = vadd.f32 %v45, %v215
  %v239 = vadd.f32 %v46, %v218
  %v240 = vadd.f32 %v47, %v220
  %v241 = vadd.f32 %v48, %v223
  %v242 = vadd.f32 %v49, %v225
  %243 = vst [vmem:[#allocation2] sm:$0xff] %v227
  %244 = vst [vmem:[#allocation2 + $0x8] sm:$0xff] %v228
  %245 = vst [vmem:[#allocation2 + $0x10] sm:$0xff] %v229
  %246 = vst [vmem:[#allocation2 + $0x18] sm:$0xff] %v230
  %247 = vst [vmem:[#allocation2 + $0x20] sm:$0xff] %v231
  %248 = vst [vmem:[#allocation2 + $0x28] sm:$0xff] %v232
  %249 = vst [vmem:[#allocation2 + $0x30] sm:$0xff] %v233
  %250 = vst [vmem:[#allocation2 + $0x38] sm:$0xff] %v234
  %251 = vst [vmem:[#allocation2 + $0x40] sm:$0xff] %v235
  %252 = vst [vmem:[#allocation2 + $0x48] sm:$0xff] %v236
  %253 = vst [vmem:[#allocation2 + $0x50] sm:$0xff] %v237
  %254 = vst [vmem:[#allocation2 + $0x58] sm:$0xff] %v238
  %255 = vst [vmem:[#allocation2 + $0x60] sm:$0xff] %v239
  %256 = vst [vmem:[#allocation2 + $0x68] sm:$0xff] %v240
  %257 = vst [vmem:[#allocation2 + $0x70] sm:$0xff] %v241
  %258 = vst [vmem:[#allocation2 + $0x78] sm:$0xff] %v242
  // Predicated region
  $region18: #{bottleneck_forward.5} parent=0 // pred_check
    %p259 = pneg %p14
  $region19: #{bottleneck_forward.5} parent=0 // pred_check_branch
    %261 = sbr.rel (%p259) target = $region21
  $region20: #{bottleneck_forward.5} parent=0 // pred_region
    %v262 = vld [vmem:[#allocation2] sm:$0xff]
    %v263 = vld [vmem:[#allocation2 + $0x8] sm:$0xff]
    %v264 = vld [vmem:[#allocation2 + $0x10] sm:$0xff]
    %v265 = vld [vmem:[#allocation2 + $0x18] sm:$0xff]
    %v266 = vld [vmem:[#allocation2 + $0x20] sm:$0xff]
    %v267 = vld [vmem:[#allocation2 + $0x28] sm:$0xff]
    %v268 = vld [vmem:[#allocation2 + $0x30] sm:$0xff]
    %v269 = vld [vmem:[#allocation2 + $0x38] sm:$0xff]
    %v270 = vld [vmem:[#allocation2 + $0x40] sm:$0xff]
    %v271 = vld [vmem:[#allocation2 + $0x48] sm:$0xff]
    %v272 = vld [vmem:[#allocation2 + $0x50] sm:$0xff]
    %v273 = vld [vmem:[#allocation2 + $0x58] sm:$0xff]
    %v274 = vld [vmem:[#allocation2 + $0x60] sm:$0xff]
    %v275 = vld [vmem:[#allocation2 + $0x68] sm:$0xff]
    %v276 = vld [vmem:[#allocation2 + $0x70] sm:$0xff]
    %v277 = vld [vmem:[#allocation2 + $0x78] sm:$0xff]
    %v278 = vld [vmem:[%s2] sm:$0x1]
    %v280 = vperm.slane %v278, 0
    %v282 = vadd.f32 %v262, %v280
    %v283 = vadd.f32 %v263, %v280
    %v284 = vadd.f32 %v264, %v280
    %v285 = vadd.f32 %v265, %v280
    %v286 = vadd.f32 %v266, %v280
    %v287 = vadd.f32 %v267, %v280
    %v288 = vadd.f32 %v268, %v280
    %v289 = vadd.f32 %v269, %v280
    %v290 = vadd.f32 %v270, %v280
    %v291 = vadd.f32 %v271, %v280
    %v292 = vadd.f32 %v272, %v280
    %v293 = vadd.f32 %v273, %v280
    %v294 = vadd.f32 %v274, %v280
    %v295 = vadd.f32 %v275, %v280
    %v296 = vadd.f32 %v276, %v280
    %v297 = vadd.f32 %v277, %v280
    %v298 = vmax.f32 %v282, 0.0
    %v299 = vmax.f32 %v283, 0.0
    %v300 = vmax.f32 %v284, 0.0
    %v301 = vmax.f32 %v285, 0.0
    %v302 = vmax.f32 %v286, 0.0
    %v303 = vmax.f32 %v287, 0.0
    %v304 = vmax.f32 %v288, 0.0
    %v305 = vmax.f32 %v289, 0.0
    %v306 = vmax.f32 %v290, 0.0
    %v307 = vmax.f32 %v291, 0.0
    %v308 = vmax.f32 %v292, 0.0
    %v309 = vmax.f32 %v293, 0.0
    %v310 = vmax.f32 %v294, 0.0
    %v311 = vmax.f32 %v295, 0.0
    %v312 = vmax.f32 %v296, 0.0
    %v313 = vmax.f32 %v297, 0.0
    %v314 = vpack.c.bf16 %v298, %v298
    %v315 = vpack.c.bf16 %v299, %v299
    %v316 = vpack.c.bf16 %v300, %v300
    %v317 = vpack.c.bf16 %v301, %v301
    %v318 = vpack.c.bf16 %v302, %v302
    %v319 = vpack.c.bf16 %v303, %v303
    %v320 = vpack.c.bf16 %v304, %v304
    %v321 = vpack.c.bf16 %v305, %v305
    %v322 = vpack.c.bf16 %v306, %v306
    %v323 = vpack.c.bf16 %v307, %v307
    %v324 = vpack.c.bf16 %v308, %v308
    %v325 = vpack.c.bf16 %v309, %v309
    %v326 = vpack.c.bf16 %v310, %v310
    %v327 = vpack.c.bf16 %v311, %v311
    %v328 = vpack.c.bf16 %v312, %v312
    %v329 = vpack.c.bf16 %v313, %v313
    %330 = vst [vmem:[%s3] sm:$0xf] %v314
    %331 = vst [vmem:[%s3 + $0x4] sm:$0xf] %v315
    %332 = vst [vmem:[%s3 + $0x8] sm:$0xf] %v316
    %333 = vst [vmem:[%s3 + $0xc] sm:$0xf] %v317
    %334 = vst [vmem:[%s3 + $0x10] sm:$0xf] %v318
    %335 = vst [vmem:[%s3 + $0x14] sm:$0xf] %v319
    %336 = vst [vmem:[%s3 + $0x18] sm:$0xf] %v320
    %337 = vst [vmem:[%s3 + $0x1c] sm:$0xf] %v321
    %338 = vst [vmem:[%s3 + $0x20] sm:$0xf] %v322
    %339 = vst [vmem:[%s3 + $0x24] sm:$0xf] %v323
    %340 = vst [vmem:[%s3 + $0x28] sm:$0xf] %v324
    %341 = vst [vmem:[%s3 + $0x2c] sm:$0xf] %v325
    %342 = vst [vmem:[%s3 + $0x30] sm:$0xf] %v326
    %343 = vst [vmem:[%s3 + $0x34] sm:$0xf] %v327
    %344 = vst [vmem:[%s3 + $0x38] sm:$0xf] %v328
    %345 = vst [vmem:[%s3 + $0x3c] sm:$0xf] %v329
  $region21: #{bottleneck_forward.5} parent=0 // pred_fallthru
    _
  // Predicated region
  $region22: #{bottleneck_forward.5} parent=0 // pred_check
    _
  $region23: #{bottleneck_forward.5} parent=0 // pred_check_branch
    %347 = sbr.rel (0) target = $region25
  $region24: #{bottleneck_forward.5} parent=0 // pred_region
    _
  $region25: #{bottleneck_forward.5} parent=0 // pred_fallthru
    _
  // Predicated region
  $region26: #{bottleneck_forward.5} parent=0 // pred_check
    _
  $region27: #{bottleneck_forward.5} parent=0 // pred_check_branch
    %349 = sbr.rel (0) target = $region29
  $region28: #{bottleneck_forward.5} parent=0 // pred_region
    _
  $region29: #{bottleneck_forward.5} parent=0 // pred_fallthru
    _

// kernel: bottleneck_forward.6
$region0: #{bottleneck_forward.6}
  #allocation0 [shape = 'u32[]', space=smem, size = 0x4, offset = 0x4, fixed_abs, tag = 'smem constant byte address 0x4 - core index']
  #allocation1 [shape = 'u32[72,128]{1,0:T(1,128)}', space=vmem, size = 0x9000, scoped, tag = 'internal scratch']
  #allocation2 [shape = 'f32[32,128]{1,0:T(8,128)}', space=vmem, size = 0x4000, scoped, tag = 'scratch operand']
  %s0 = inlined_call_operand.vmem [shape: bf16[32,128], index: 0, kind: input, shape index: {}]
  %s1 = inlined_call_operand.vmem [shape: bf16[128,128], index: 1, kind: input, shape index: {}]
  %s2 = inlined_call_operand.vmem [shape: f32[1,128], index: 2, kind: input, shape index: {}]
  %s3 = inlined_call_operand.vmem [shape: bf16[32,128], index: 3, kind: output, shape index: {}]
  %s4 = sld [smem:[#allocation0]]
  $region30: #{bottleneck_forward.6} parent=0
    _
  %s6 = ssub.s32 1, %s4
  %s7 = scalar_select 0, %s6, %s4
  // Predicated region
  $region2: #{bottleneck_forward.6} parent=0 // pred_check
    _
  $region3: #{bottleneck_forward.6} parent=0 // pred_check_branch
    %9 = sbr.rel (0) target = $region5
  $region4: #{bottleneck_forward.6} parent=0 // pred_region
    _
  $region5: #{bottleneck_forward.6} parent=0 // pred_fallthru
    _
  // Predicated region
  $region6: #{bottleneck_forward.6} parent=0 // pred_check
    _
  $region7: #{bottleneck_forward.6} parent=0 // pred_check_branch
    %11 = sbr.rel (0) target = $region9
  $region8: #{bottleneck_forward.6} parent=0 // pred_region
    _
  $region9: #{bottleneck_forward.6} parent=0 // pred_fallthru
    _
  // Predicated region
  $region10: #{bottleneck_forward.6} parent=0 // pred_check
    _
  $region11: #{bottleneck_forward.6} parent=0 // pred_check_branch
    %13 = sbr.rel (0) target = $region13
  $region12: #{bottleneck_forward.6} parent=0 // pred_region
    _
  $region13: #{bottleneck_forward.6} parent=0 // pred_fallthru
    _
  %p14 = scmp.eq.s32.totalorder 0, 0
  // Predicated region
  $region14: #{bottleneck_forward.6} parent=0 // pred_check
    %p15 = pneg %p14
  $region15: #{bottleneck_forward.6} parent=0 // pred_check_branch
    %17 = sbr.rel (%p15) target = $region17
  $region16: #{bottleneck_forward.6} parent=0 // pred_region
    %18 = vst [vmem:[#allocation2] sm:$0xff] 0.0
    %19 = vst [vmem:[#allocation2 + $0x8] sm:$0xff] 0.0
    %20 = vst [vmem:[#allocation2 + $0x10] sm:$0xff] 0.0
    %21 = vst [vmem:[#allocation2 + $0x18] sm:$0xff] 0.0
  $region17: #{bottleneck_forward.6} parent=0 // pred_fallthru
    _
  %v22 = vld [vmem:[#allocation2] sm:$0xff]
  %v23 = vld [vmem:[#allocation2 + $0x8] sm:$0xff]
  %v24 = vld [vmem:[#allocation2 + $0x10] sm:$0xff]
  %v25 = vld [vmem:[#allocation2 + $0x18] sm:$0xff]
  %v26 = vld [vmem:[%s0] sm:$0xf]
  %v27 = vld [vmem:[%s0 + $0x4] sm:$0xf]
  %v28 = vld [vmem:[%s0 + $0x8] sm:$0xf]
  %v29 = vld [vmem:[%s0 + $0xc] sm:$0xf]
  %v30 = vld [vmem:[%s1] sm:$0xf]
  %v31 = vld [vmem:[%s1 + $0x4] sm:$0xf]
  %v32 = vld [vmem:[%s1 + $0x8] sm:$0xf]
  %v33 = vld [vmem:[%s1 + $0xc] sm:$0xf]
  %v34 = vld [vmem:[%s1 + $0x10] sm:$0xf]
  %v35 = vld [vmem:[%s1 + $0x14] sm:$0xf]
  %v36 = vld [vmem:[%s1 + $0x18] sm:$0xf]
  %v37 = vld [vmem:[%s1 + $0x1c] sm:$0xf]
  %v38 = vld [vmem:[%s1 + $0x20] sm:$0xf]
  %v39 = vld [vmem:[%s1 + $0x24] sm:$0xf]
  %v40 = vld [vmem:[%s1 + $0x28] sm:$0xf]
  %v41 = vld [vmem:[%s1 + $0x2c] sm:$0xf]
  %v42 = vld [vmem:[%s1 + $0x30] sm:$0xf]
  %v43 = vld [vmem:[%s1 + $0x34] sm:$0xf]
  %v44 = vld [vmem:[%s1 + $0x38] sm:$0xf]
  %v45 = vld [vmem:[%s1 + $0x3c] sm:$0xf]
  %v50 = vunpack.c.l.b16 %v26
  %v51 = vunpack.c.l.b16 %v27
  %v52 = vunpack.c.l.b16 %v28
  %v53 = vunpack.c.l.b16 %v29
  %v54 = vpack.c.b16 %v51, %v50
  %v55 = vpack.c.b16 %v53, %v52
  %v74 = vunpack.c.l.b16 %v30
  %v75 = vunpack.c.l.b16 %v31
  %v76 = vunpack.c.l.b16 %v32
  %v77 = vunpack.c.l.b16 %v33
  %v78 = vunpack.c.l.b16 %v34
  %v79 = vunpack.c.l.b16 %v35
  %v80 = vunpack.c.l.b16 %v36
  %v81 = vunpack.c.l.b16 %v37
  %v82 = vunpack.c.l.b16 %v38
  %v83 = vunpack.c.l.b16 %v39
  %v84 = vunpack.c.l.b16 %v40
  %v85 = vunpack.c.l.b16 %v41
  %v86 = vunpack.c.l.b16 %v42
  %v87 = vunpack.c.l.b16 %v43
  %v88 = vunpack.c.l.b16 %v44
  %v89 = vunpack.c.l.b16 %v45
  %v90 = vpack.c.b16 %v75, %v74
  %v91 = vpack.c.b16 %v77, %v76
  %v92 = vpack.c.b16 %v79, %v78
  %v93 = vpack.c.b16 %v81, %v80
  %v94 = vpack.c.b16 %v83, %v82
  %v95 = vpack.c.b16 %v85, %v84
  %v96 = vpack.c.b16 %v87, %v86
  %v97 = vpack.c.b16 %v89, %v88
  %106 = vmatpush.bf16.msra.mxu0 %v97
  %107 = vmatpush.bf16.msra.mxu0 %v96
  %108 = vmatpush.bf16.msra.mxu0 %v95
  %109 = vmatpush.bf16.msra.mxu0 %v94
  %110 = vmatpush.bf16.msra.mxu0 %v93
  %111 = vmatpush.bf16.msra.mxu0 %v92
  %112 = vmatpush.bf16.msra.mxu0 %v91
  %113 = vmatpush.bf16.msra.mxu0 %v90
  %114 = vmatmul.bf16.gmra.mxu0 %v54
  %v115 = vpop.f32.mrf.mxu0
  %v116 = vadd.f32 0.0, %v115
  %v117 = vpop.f32.mrf.mxu0
  %v118 = vadd.f32 0.0, %v117
  %119 = vmatmul.bf16.gmra.mxu0 %v55
  %v120 = vpop.f32.mrf.mxu0
  %v121 = vadd.f32 0.0, %v120
  %v122 = vpop.f32.mrf.mxu0
  %v123 = vadd.f32 0.0, %v122
  %124 = vdwg.mxu0
  %v125 = vadd.f32 %v22, %v116
  %v126 = vadd.f32 %v23, %v118
  %v127 = vadd.f32 %v24, %v121
  %v128 = vadd.f32 %v25, %v123
  %129 = vst [vmem:[#allocation2] sm:$0xff] %v125
  %130 = vst [vmem:[#allocation2 + $0x8] sm:$0xff] %v126
  %131 = vst [vmem:[#allocation2 + $0x10] sm:$0xff] %v127
  %132 = vst [vmem:[#allocation2 + $0x18] sm:$0xff] %v128
  // Predicated region
  $region18: #{bottleneck_forward.6} parent=0 // pred_check
    %p133 = pneg %p14
  $region19: #{bottleneck_forward.6} parent=0 // pred_check_branch
    %135 = sbr.rel (%p133) target = $region21
  $region20: #{bottleneck_forward.6} parent=0 // pred_region
    %v136 = vld [vmem:[#allocation2] sm:$0xff]
    %v137 = vld [vmem:[#allocation2 + $0x8] sm:$0xff]
    %v138 = vld [vmem:[#allocation2 + $0x10] sm:$0xff]
    %v139 = vld [vmem:[#allocation2 + $0x18] sm:$0xff]
    %v140 = vld [vmem:[%s2] sm:$0x1]
    %v142 = vperm.slane %v140, 0
    %v144 = vadd.f32 %v136, %v142
    %v145 = vadd.f32 %v137, %v142
    %v146 = vadd.f32 %v138, %v142
    %v147 = vadd.f32 %v139, %v142
    %v148 = vmax.f32 %v144, 0.0
    %v149 = vmax.f32 %v145, 0.0
    %v150 = vmax.f32 %v146, 0.0
    %v151 = vmax.f32 %v147, 0.0
    %v152 = vpack.c.bf16 %v148, %v148
    %v153 = vpack.c.bf16 %v149, %v149
    %v154 = vpack.c.bf16 %v150, %v150
    %v155 = vpack.c.bf16 %v151, %v151
    %156 = vst [vmem:[%s3] sm:$0xf] %v152
    %157 = vst [vmem:[%s3 + $0x4] sm:$0xf] %v153
    %158 = vst [vmem:[%s3 + $0x8] sm:$0xf] %v154
    %159 = vst [vmem:[%s3 + $0xc] sm:$0xf] %v155
  $region21: #{bottleneck_forward.6} parent=0 // pred_fallthru
    _
  // Predicated region
  $region22: #{bottleneck_forward.6} parent=0 // pred_check
    _
  $region23: #{bottleneck_forward.6} parent=0 // pred_check_branch
    %161 = sbr.rel (0) target = $region25
  $region24: #{bottleneck_forward.6} parent=0 // pred_region
    _
  $region25: #{bottleneck_forward.6} parent=0 // pred_fallthru
    _
  // Predicated region
  $region26: #{bottleneck_forward.6} parent=0 // pred_check
    _
  $region27: #{bottleneck_forward.6} parent=0 // pred_check_branch
    %163 = sbr.rel (0) target = $region29
  $region28: #{bottleneck_forward.6} parent=0 // pred_region
    _
  $region29: #{bottleneck_forward.6} parent=0 // pred_fallthru
    _

// kernel: bottleneck_forward.4
$region0: #{bottleneck_forward.4}
  #allocation0 [shape = 'u32[]', space=smem, size = 0x4, offset = 0x4, fixed_abs, tag = 'smem constant byte address 0x4 - core index']
  #allocation1 [shape = 'u32[72,128]{1,0:T(1,128)}', space=vmem, size = 0x9000, scoped, tag = 'internal scratch']
  #allocation2 [shape = 'f32[32,128]{1,0:T(8,128)}', space=vmem, size = 0x4000, scoped, tag = 'scratch operand']
  %s0 = inlined_call_operand.vmem [shape: bf16[32,128], index: 0, kind: input, shape index: {}]
  %s1 = inlined_call_operand.vmem [shape: bf16[128,128], index: 1, kind: input, shape index: {}]
  %s2 = inlined_call_operand.vmem [shape: f32[1,128], index: 2, kind: input, shape index: {}]
  %s3 = inlined_call_operand.vmem [shape: bf16[32,128], index: 3, kind: output, shape index: {}]
  %s4 = sld [smem:[#allocation0]]
  $region30: #{bottleneck_forward.4} parent=0
    _
  %s6 = ssub.s32 1, %s4
  %s7 = scalar_select 0, %s6, %s4
  // Predicated region
  $region2: #{bottleneck_forward.4} parent=0 // pred_check
    _
  $region3: #{bottleneck_forward.4} parent=0 // pred_check_branch
    %9 = sbr.rel (0) target = $region5
  $region4: #{bottleneck_forward.4} parent=0 // pred_region
    _
  $region5: #{bottleneck_forward.4} parent=0 // pred_fallthru
    _
  // Predicated region
  $region6: #{bottleneck_forward.4} parent=0 // pred_check
    _
  $region7: #{bottleneck_forward.4} parent=0 // pred_check_branch
    %11 = sbr.rel (0) target = $region9
  $region8: #{bottleneck_forward.4} parent=0 // pred_region
    _
  $region9: #{bottleneck_forward.4} parent=0 // pred_fallthru
    _
  // Predicated region
  $region10: #{bottleneck_forward.4} parent=0 // pred_check
    _
  $region11: #{bottleneck_forward.4} parent=0 // pred_check_branch
    %13 = sbr.rel (0) target = $region13
  $region12: #{bottleneck_forward.4} parent=0 // pred_region
    _
  $region13: #{bottleneck_forward.4} parent=0 // pred_fallthru
    _
  %p14 = scmp.eq.s32.totalorder 0, 0
  // Predicated region
  $region14: #{bottleneck_forward.4} parent=0 // pred_check
    %p15 = pneg %p14
  $region15: #{bottleneck_forward.4} parent=0 // pred_check_branch
    %17 = sbr.rel (%p15) target = $region17
  $region16: #{bottleneck_forward.4} parent=0 // pred_region
    %18 = vst [vmem:[#allocation2] sm:$0xff] 0.0
    %19 = vst [vmem:[#allocation2 + $0x8] sm:$0xff] 0.0
    %20 = vst [vmem:[#allocation2 + $0x10] sm:$0xff] 0.0
    %21 = vst [vmem:[#allocation2 + $0x18] sm:$0xff] 0.0
  $region17: #{bottleneck_forward.4} parent=0 // pred_fallthru
    _
  %v22 = vld [vmem:[#allocation2] sm:$0xff]
  %v23 = vld [vmem:[#allocation2 + $0x8] sm:$0xff]
  %v24 = vld [vmem:[#allocation2 + $0x10] sm:$0xff]
  %v25 = vld [vmem:[#allocation2 + $0x18] sm:$0xff]
  %v26 = vld [vmem:[%s0] sm:$0xf]
  %v27 = vld [vmem:[%s0 + $0x4] sm:$0xf]
  %v28 = vld [vmem:[%s0 + $0x8] sm:$0xf]
  %v29 = vld [vmem:[%s0 + $0xc] sm:$0xf]
  %v30 = vld [vmem:[%s1] sm:$0xf]
  %v31 = vld [vmem:[%s1 + $0x4] sm:$0xf]
  %v32 = vld [vmem:[%s1 + $0x8] sm:$0xf]
  %v33 = vld [vmem:[%s1 + $0xc] sm:$0xf]
  %v34 = vld [vmem:[%s1 + $0x10] sm:$0xf]
  %v35 = vld [vmem:[%s1 + $0x14] sm:$0xf]
  %v36 = vld [vmem:[%s1 + $0x18] sm:$0xf]
  %v37 = vld [vmem:[%s1 + $0x1c] sm:$0xf]
  %v38 = vld [vmem:[%s1 + $0x20] sm:$0xf]
  %v39 = vld [vmem:[%s1 + $0x24] sm:$0xf]
  %v40 = vld [vmem:[%s1 + $0x28] sm:$0xf]
  %v41 = vld [vmem:[%s1 + $0x2c] sm:$0xf]
  %v42 = vld [vmem:[%s1 + $0x30] sm:$0xf]
  %v43 = vld [vmem:[%s1 + $0x34] sm:$0xf]
  %v44 = vld [vmem:[%s1 + $0x38] sm:$0xf]
  %v45 = vld [vmem:[%s1 + $0x3c] sm:$0xf]
  %v50 = vunpack.c.l.b16 %v26
  %v51 = vunpack.c.l.b16 %v27
  %v52 = vunpack.c.l.b16 %v28
  %v53 = vunpack.c.l.b16 %v29
  %v54 = vpack.c.b16 %v51, %v50
  %v55 = vpack.c.b16 %v53, %v52
  %v74 = vunpack.c.l.b16 %v30
  %v75 = vunpack.c.l.b16 %v31
  %v76 = vunpack.c.l.b16 %v32
  %v77 = vunpack.c.l.b16 %v33
  %v78 = vunpack.c.l.b16 %v34
  %v79 = vunpack.c.l.b16 %v35
  %v80 = vunpack.c.l.b16 %v36
  %v81 = vunpack.c.l.b16 %v37
  %v82 = vunpack.c.l.b16 %v38
  %v83 = vunpack.c.l.b16 %v39
  %v84 = vunpack.c.l.b16 %v40
  %v85 = vunpack.c.l.b16 %v41
  %v86 = vunpack.c.l.b16 %v42
  %v87 = vunpack.c.l.b16 %v43
  %v88 = vunpack.c.l.b16 %v44
  %v89 = vunpack.c.l.b16 %v45
  %v90 = vpack.c.b16 %v75, %v74
  %v91 = vpack.c.b16 %v77, %v76
  %v92 = vpack.c.b16 %v79, %v78
  %v93 = vpack.c.b16 %v81, %v80
  %v94 = vpack.c.b16 %v83, %v82
  %v95 = vpack.c.b16 %v85, %v84
  %v96 = vpack.c.b16 %v87, %v86
  %v97 = vpack.c.b16 %v89, %v88
  %106 = vmatpush.bf16.msra.mxu0 %v97
  %107 = vmatpush.bf16.msra.mxu0 %v96
  %108 = vmatpush.bf16.msra.mxu0 %v95
  %109 = vmatpush.bf16.msra.mxu0 %v94
  %110 = vmatpush.bf16.msra.mxu0 %v93
  %111 = vmatpush.bf16.msra.mxu0 %v92
  %112 = vmatpush.bf16.msra.mxu0 %v91
  %113 = vmatpush.bf16.msra.mxu0 %v90
  %114 = vmatmul.bf16.gmra.mxu0 %v54
  %v115 = vpop.f32.mrf.mxu0
  %v116 = vadd.f32 0.0, %v115
  %v117 = vpop.f32.mrf.mxu0
  %v118 = vadd.f32 0.0, %v117
  %119 = vmatmul.bf16.gmra.mxu0 %v55
  %v120 = vpop.f32.mrf.mxu0
  %v121 = vadd.f32 0.0, %v120
  %v122 = vpop.f32.mrf.mxu0
  %v123 = vadd.f32 0.0, %v122
  %124 = vdwg.mxu0
  %v125 = vadd.f32 %v22, %v116
  %v126 = vadd.f32 %v23, %v118
  %v127 = vadd.f32 %v24, %v121
  %v128 = vadd.f32 %v25, %v123
  %129 = vst [vmem:[#allocation2] sm:$0xff] %v125
  %130 = vst [vmem:[#allocation2 + $0x8] sm:$0xff] %v126
  %131 = vst [vmem:[#allocation2 + $0x10] sm:$0xff] %v127
  %132 = vst [vmem:[#allocation2 + $0x18] sm:$0xff] %v128
  // Predicated region
  $region18: #{bottleneck_forward.4} parent=0 // pred_check
    %p133 = pneg %p14
  $region19: #{bottleneck_forward.4} parent=0 // pred_check_branch
    %135 = sbr.rel (%p133) target = $region21
  $region20: #{bottleneck_forward.4} parent=0 // pred_region
    %v136 = vld [vmem:[#allocation2] sm:$0xff]
    %v137 = vld [vmem:[#allocation2 + $0x8] sm:$0xff]
    %v138 = vld [vmem:[#allocation2 + $0x10] sm:$0xff]
    %v139 = vld [vmem:[#allocation2 + $0x18] sm:$0xff]
    %v140 = vld [vmem:[%s2] sm:$0x1]
    %v142 = vperm.slane %v140, 0
    %v144 = vadd.f32 %v136, %v142
    %v145 = vadd.f32 %v137, %v142
    %v146 = vadd.f32 %v138, %v142
    %v147 = vadd.f32 %v139, %v142
    %v148 = vpack.c.bf16 %v144, %v144
    %v149 = vpack.c.bf16 %v145, %v145
    %v150 = vpack.c.bf16 %v146, %v146
    %v151 = vpack.c.bf16 %v147, %v147
    %152 = vst [vmem:[%s3] sm:$0xf] %v148
    %153 = vst [vmem:[%s3 + $0x4] sm:$0xf] %v149
    %154 = vst [vmem:[%s3 + $0x8] sm:$0xf] %v150
    %155 = vst [vmem:[%s3 + $0xc] sm:$0xf] %v151
  $region21: #{bottleneck_forward.4} parent=0 // pred_fallthru
    _
  // Predicated region
  $region22: #{bottleneck_forward.4} parent=0 // pred_check
    _
  $region23: #{bottleneck_forward.4} parent=0 // pred_check_branch
    %157 = sbr.rel (0) target = $region25
  $region24: #{bottleneck_forward.4} parent=0 // pred_region
    _
  $region25: #{bottleneck_forward.4} parent=0 // pred_fallthru
    _
  // Predicated region
  $region26: #{bottleneck_forward.4} parent=0 // pred_check
    _
  $region27: #{bottleneck_forward.4} parent=0 // pred_check_branch
    %159 = sbr.rel (0) target = $region29
  $region28: #{bottleneck_forward.4} parent=0 // pred_region
    _
  $region29: #{bottleneck_forward.4} parent=0 // pred_fallthru
    _

// kernel: bottleneck_forward.7
$region0: #{bottleneck_forward.7}
  #allocation0 [shape = 'u32[]', space=smem, size = 0x4, offset = 0x4, fixed_abs, tag = 'smem constant byte address 0x4 - core index']
  #allocation1 [shape = 'u32[72,128]{1,0:T(1,128)}', space=vmem, size = 0x9000, scoped, tag = 'internal scratch']
  #allocation2 [shape = 'f32[32,128]{1,0:T(8,128)}', space=vmem, size = 0x4000, scoped, tag = 'scratch operand']
  %s0 = inlined_call_operand.vmem [shape: bf16[32,128], index: 0, kind: input, shape index: {}]
  %s1 = inlined_call_operand.vmem [shape: bf16[128,128], index: 1, kind: input, shape index: {}]
  %s2 = inlined_call_operand.vmem [shape: f32[1,128], index: 2, kind: input, shape index: {}]
  %s3 = inlined_call_operand.vmem [shape: bf16[32,128], index: 3, kind: input, shape index: {}]
  %s4 = inlined_call_operand.hbm [shape: f32[32,128], index: 4, kind: output, shape index: {}]
  %s5 = sld [smem:[#allocation0]]
  $region34: #{bottleneck_forward.7} parent=0
    _
  %s7 = ssub.s32 1, %s5
  %s8 = scalar_select 0, %s7, %s5
  $region1: #{bottleneck_forward.7} parent=0
    #allocation3 [shape = 'u8[16384]{0}', space=vmem, size = 0x4000, scoped, tag = 'output window, operand 0, single buffered']
    #allocation4 [shape = 's32[1]{0}', space=sflag, size = 0x4, scoped, tag = 'scoped memory for bottleneck_forward.7']
    %9 = vsyncpa [#allocation4], 0
    // Predicated region
    $region2: #{bottleneck_forward.7} parent=1 // pred_check
      _
    $region3: #{bottleneck_forward.7} parent=1 // pred_check_branch
      %11 = sbr.rel (0) target = $region5
    $region4: #{bottleneck_forward.7} parent=1 // pred_region
      _
    $region5: #{bottleneck_forward.7} parent=1 // pred_fallthru
      _
    // Predicated region
    $region6: #{bottleneck_forward.7} parent=1 // pred_check
      _
    $region7: #{bottleneck_forward.7} parent=1 // pred_check_branch
      %13 = sbr.rel (0) target = $region9
    $region8: #{bottleneck_forward.7} parent=1 // pred_region
      _
    $region9: #{bottleneck_forward.7} parent=1 // pred_fallthru
      _
    // Predicated region
    $region10: #{bottleneck_forward.7} parent=1 // pred_check
      _
    $region11: #{bottleneck_forward.7} parent=1 // pred_check_branch
      %15 = sbr.rel (0) target = $region13
    $region12: #{bottleneck_forward.7} parent=1 // pred_region
      _
    $region13: #{bottleneck_forward.7} parent=1 // pred_fallthru
      _
    // Predicated region
    $region14: #{bottleneck_forward.7} parent=1 // pred_check
      _
    $region15: #{bottleneck_forward.7} parent=1 // pred_check_branch
      %17 = sbr.rel (0) target = $region17
    $region16: #{bottleneck_forward.7} parent=1 // pred_region
      _
    $region17: #{bottleneck_forward.7} parent=1 // pred_fallthru
      _
    %p18 = scmp.eq.s32.totalorder 0, 0
    // Predicated region
    $region18: #{bottleneck_forward.7} parent=1 // pred_check
      %p19 = pneg %p18
    $region19: #{bottleneck_forward.7} parent=1 // pred_check_branch
      %21 = sbr.rel (%p19) target = $region21
    $region20: #{bottleneck_forward.7} parent=1 // pred_region
      %22 = vst [vmem:[#allocation2] sm:$0xff] 0.0
      %23 = vst [vmem:[#allocation2 + $0x8] sm:$0xff] 0.0
      %24 = vst [vmem:[#allocation2 + $0x10] sm:$0xff] 0.0
      %25 = vst [vmem:[#allocation2 + $0x18] sm:$0xff] 0.0
    $region21: #{bottleneck_forward.7} parent=1 // pred_fallthru
      _
    %v26 = vld [vmem:[#allocation2] sm:$0xff]
    %v27 = vld [vmem:[#allocation2 + $0x8] sm:$0xff]
    %v28 = vld [vmem:[#allocation2 + $0x10] sm:$0xff]
    %v29 = vld [vmem:[#allocation2 + $0x18] sm:$0xff]
    %v30 = vld [vmem:[%s0] sm:$0xf]
    %v31 = vld [vmem:[%s0 + $0x4] sm:$0xf]
    %v32 = vld [vmem:[%s0 + $0x8] sm:$0xf]
    %v33 = vld [vmem:[%s0 + $0xc] sm:$0xf]
    %v34 = vld [vmem:[%s1] sm:$0xf]
    %v35 = vld [vmem:[%s1 + $0x4] sm:$0xf]
    %v36 = vld [vmem:[%s1 + $0x8] sm:$0xf]
    %v37 = vld [vmem:[%s1 + $0xc] sm:$0xf]
    %v38 = vld [vmem:[%s1 + $0x10] sm:$0xf]
    %v39 = vld [vmem:[%s1 + $0x14] sm:$0xf]
    %v40 = vld [vmem:[%s1 + $0x18] sm:$0xf]
    %v41 = vld [vmem:[%s1 + $0x1c] sm:$0xf]
    %v42 = vld [vmem:[%s1 + $0x20] sm:$0xf]
    %v43 = vld [vmem:[%s1 + $0x24] sm:$0xf]
    %v44 = vld [vmem:[%s1 + $0x28] sm:$0xf]
    %v45 = vld [vmem:[%s1 + $0x2c] sm:$0xf]
    %v46 = vld [vmem:[%s1 + $0x30] sm:$0xf]
    %v47 = vld [vmem:[%s1 + $0x34] sm:$0xf]
    %v48 = vld [vmem:[%s1 + $0x38] sm:$0xf]
    %v49 = vld [vmem:[%s1 + $0x3c] sm:$0xf]
    %v54 = vunpack.c.l.b16 %v30
    %v55 = vunpack.c.l.b16 %v31
    %v56 = vunpack.c.l.b16 %v32
    %v57 = vunpack.c.l.b16 %v33
    %v58 = vpack.c.b16 %v55, %v54
    %v59 = vpack.c.b16 %v57, %v56
    %v78 = vunpack.c.l.b16 %v34
    %v79 = vunpack.c.l.b16 %v35
    %v80 = vunpack.c.l.b16 %v36
    %v81 = vunpack.c.l.b16 %v37
    %v82 = vunpack.c.l.b16 %v38
    %v83 = vunpack.c.l.b16 %v39
    %v84 = vunpack.c.l.b16 %v40
    %v85 = vunpack.c.l.b16 %v41
    %v86 = vunpack.c.l.b16 %v42
    %v87 = vunpack.c.l.b16 %v43
    %v88 = vunpack.c.l.b16 %v44
    %v89 = vunpack.c.l.b16 %v45
    %v90 = vunpack.c.l.b16 %v46
    %v91 = vunpack.c.l.b16 %v47
    %v92 = vunpack.c.l.b16 %v48
    %v93 = vunpack.c.l.b16 %v49
    %v94 = vpack.c.b16 %v79, %v78
    %v95 = vpack.c.b16 %v81, %v80
    %v96 = vpack.c.b16 %v83, %v82
    %v97 = vpack.c.b16 %v85, %v84
    %v98 = vpack.c.b16 %v87, %v86
    %v99 = vpack.c.b16 %v89, %v88
    %v100 = vpack.c.b16 %v91, %v90
    %v101 = vpack.c.b16 %v93, %v92
    %110 = vmatpush.bf16.msra.mxu0 %v101
    %111 = vmatpush.bf16.msra.mxu0 %v100
    %112 = vmatpush.bf16.msra.mxu0 %v99
    %113 = vmatpush.bf16.msra.mxu0 %v98
    %114 = vmatpush.bf16.msra.mxu0 %v97
    %115 = vmatpush.bf16.msra.mxu0 %v96
    %116 = vmatpush.bf16.msra.mxu0 %v95
    %117 = vmatpush.bf16.msra.mxu0 %v94
    %118 = vmatmul.bf16.gmra.mxu0 %v58
    %v119 = vpop.f32.mrf.mxu0
    %v120 = vadd.f32 0.0, %v119
    %v121 = vpop.f32.mrf.mxu0
    %v122 = vadd.f32 0.0, %v121
    %123 = vmatmul.bf16.gmra.mxu0 %v59
    %v124 = vpop.f32.mrf.mxu0
    %v125 = vadd.f32 0.0, %v124
    %v126 = vpop.f32.mrf.mxu0
    %v127 = vadd.f32 0.0, %v126
    %128 = vdwg.mxu0
    %v129 = vadd.f32 %v26, %v120
    %v130 = vadd.f32 %v27, %v122
    %v131 = vadd.f32 %v28, %v125
    %v132 = vadd.f32 %v29, %v127
    %133 = vst [vmem:[#allocation2] sm:$0xff] %v129
    %134 = vst [vmem:[#allocation2 + $0x8] sm:$0xff] %v130
    %135 = vst [vmem:[#allocation2 + $0x10] sm:$0xff] %v131
    %136 = vst [vmem:[#allocation2 + $0x18] sm:$0xff] %v132
    // Predicated region
    $region22: #{bottleneck_forward.7} parent=1 // pred_check
      %p137 = pneg %p18
    $region23: #{bottleneck_forward.7} parent=1 // pred_check_branch
      %139 = sbr.rel (%p137) target = $region25
    $region24: #{bottleneck_forward.7} parent=1 // pred_region
      %v140 = vld [vmem:[#allocation2] sm:$0xff]
      %v141 = vld [vmem:[#allocation2 + $0x8] sm:$0xff]
      %v142 = vld [vmem:[#allocation2 + $0x10] sm:$0xff]
      %v143 = vld [vmem:[#allocation2 + $0x18] sm:$0xff]
      %v144 = vld [vmem:[%s2] sm:$0x1]
      %v146 = vperm.slane %v144, 0
      %v148 = vadd.f32 %v140, %v146
      %v149 = vadd.f32 %v141, %v146
      %v150 = vadd.f32 %v142, %v146
      %v151 = vadd.f32 %v143, %v146
      %v152 = vld [vmem:[%s3] sm:$0xf]
      %v153 = vld [vmem:[%s3 + $0x4] sm:$0xf]
      %v154 = vld [vmem:[%s3 + $0x8] sm:$0xf]
      %v155 = vld [vmem:[%s3 + $0xc] sm:$0xf]
      %v156 = vunpack.c.l.bf16 %v152
      %v157 = vunpack.c.l.bf16 %v153
      %v158 = vunpack.c.l.bf16 %v154
      %v159 = vunpack.c.l.bf16 %v155
      %v160 = vadd.f32 %v148, %v156
      %v161 = vadd.f32 %v149, %v157
      %v162 = vadd.f32 %v150, %v158
      %v163 = vadd.f32 %v151, %v159
      %v164 = vmax.f32 %v160, 0.0
      %v165 = vmax.f32 %v161, 0.0
      %v166 = vmax.f32 %v162, 0.0
      %v167 = vmax.f32 %v163, 0.0
      %168 = vst [vmem:[#allocation3] sm:$0xff] %v164
      %169 = vst [vmem:[#allocation3 + $0x8] sm:$0xff] %v165
      %170 = vst [vmem:[#allocation3 + $0x10] sm:$0xff] %v166
      %171 = vst [vmem:[#allocation3 + $0x18] sm:$0xff] %v167
    $region25: #{bottleneck_forward.7} parent=1 // pred_fallthru
      _
    // Predicated region
    $region26: #{bottleneck_forward.7} parent=1 // pred_check
      _
    $region27: #{bottleneck_forward.7} parent=1 // pred_check_branch
      %173 = sbr.rel (0) target = $region29
    $region28: #{bottleneck_forward.7} parent=1 // pred_region
      %175 = vsyncadd [#allocation4], 0
      %s176 = sshll.u32 [#allocation3], 4
      %s177 = int_to_ptr.vmem [resolvable:$true] %s176
      %s178 = sshll.u32 %s4, 4
      %s179 = int_to_ptr.hbm [resolvable:$true] %s178
      %184 = dma.vmem_to_hbm [thread:$0]  %s177, 512, %s179, [#allocation4], 128, 128, 8
    $region29: #{bottleneck_forward.7} parent=1 // pred_fallthru
      _
    // Predicated region
    $region30: #{bottleneck_forward.7} parent=1 // pred_check
      _
    $region31: #{bottleneck_forward.7} parent=1 // pred_check_branch
      %186 = sbr.rel (0) target = $region33
    $region32: #{bottleneck_forward.7} parent=1 // pred_region
      %188 = dma.done [#allocation4], 512
    $region33: #{bottleneck_forward.7} parent=1 // pred_fallthru
      _
    %189 = vsyncpa [#allocation4], 1

</llo_original>
